<compile_context>
chip_gen: v5e
topology: v5e:2x2
jax: 0.10.0
libtpu: 0.0.40
codegen_flags: <defaults>
</compile_context>

<pallas_src>
import functools

import jax
import jax.numpy as jnp
from jax.experimental import pallas as pl
from jax.experimental.pallas import tpu as pltpu

EPS = 1e-5
_VMEM_BUDGET = 8 << 20  # conservative: fits v5e 16 MiB scoped default and v7x 64 MiB physical


def _pick_tm(M, bytes_per_row, fixed_bytes=0, budget=_VMEM_BUDGET):
    """Largest sublane-aligned row tile dividing M whose double-buffered streaming blocks
    plus resident (weight) block fit the VMEM budget."""
    for t in (2048, 1024, 512, 256, 128, 64, 32, 16, 8):
        if M % t == 0 and 2 * t * bytes_per_row + fixed_bytes <= budget:
            return t
    return M


# --------------------------------- Pallas kernels ---------------------------------

def mm_stats_kernel(*refs, fuse_bn_relu):
    """(optional BN-affine+ReLU on the input tile) -> bf16 MXU matmul -> f32 output,
    plus per-tile (8, C) sum / sum-of-squares partials for BatchNorm batch statistics."""
    if fuse_bn_relu:
        x_ref, w_ref, s_ref, b_ref, o_ref, psum_ref, pssq_ref = refs
    else:
        x_ref, w_ref, o_ref, psum_ref, pssq_ref = refs

    x = x_ref[...]
    if fuse_bn_relu:
        x = jnp.maximum(x * s_ref[...] + b_ref[...], 0.0)       # fused BN + ReLU (f32)
    y = jnp.dot(x.astype(jnp.bfloat16), w_ref[...],
                preferred_element_type=jnp.float32)
    o_ref[...] = y.astype(o_ref.dtype)

    tm, C = y.shape
    yr = y.reshape(tm // 8, 8, C)          # keep sublane structure: per-step VPU-only adds,
    psum_ref[0] = jnp.sum(yr, axis=0)      # final cross-sublane reduce is a tiny XLA sum
    pssq_ref[0] = jnp.sum(yr * yr, axis=0)


def conv3x3_kernel(y1_ref, w_ref, s_ref, b_ref,
                   y2_ref, psum_ref, pssq_ref, pad_ref,
                   *, H, W, Ho, Wo, stride):
    """3x3 conv (pad=1) as 9 shifted MXU matmuls consuming the *raw* conv1 output:
    BN1+ReLU is applied on the fly, the zero-padded halo lives only in a VMEM scratch
    buffer (no 9x im2col tensor in HBM), and BN2 batch-stat partials are an epilogue."""
    C1 = y1_ref.shape[-1]
    C2 = w_ref.shape[-1]

    a = y1_ref[0].reshape(H * W, C1)
    a = jnp.maximum(a * s_ref[...] + b_ref[...], 0.0)            # fused bn1 + relu (f32)

    pad_ref[...] = jnp.zeros_like(pad_ref)                       # rebuild halo every step (megacore-safe)
    pad_ref[1:H + 1, 1:W + 1, :] = a.reshape(H, W, C1)

    acc = jnp.zeros((Ho * Wo, C2), jnp.float32)
    for kh in range(3):
        for kw in range(3):
            if stride == 1:
                tap = pad_ref[kh:kh + Ho, kw:kw + Wo, :]
            else:
                # TODO(synk): stride>1 uses strided sublane loads; functional but untuned.
                tap = pad_ref[pl.ds(kh, Ho, stride), pl.ds(kw, Wo, stride), :]
            acc = acc + jnp.dot(tap.reshape(Ho * Wo, C1).astype(jnp.bfloat16),
                                w_ref[kh * 3 + kw],
                                preferred_element_type=jnp.float32)

    y2_ref[0] = acc.reshape(Ho, Wo, C2)
    accr = acc.reshape(Ho * Wo // 8, 8, C2)
    psum_ref[0] = jnp.sum(accr, axis=0)
    pssq_ref[0] = jnp.sum(accr * accr, axis=0)


def bn_add_relu_kernel(x_ref, s_ref, b_ref, r_ref, rs_ref, rb_ref, o_ref):
    y = (x_ref[...] * s_ref[...] + b_ref[...]
         + r_ref[...] * rs_ref[...] + rb_ref[...])
    o_ref[...] = jnp.maximum(y, 0.0)


# --------------------------------- pallas_call wrappers ---------------------------------

def pallas_matmul_stats(x, w_bf16, scale=None, bias=None):
    """y = (relu(x*scale+bias) if scale is given else x) @ w,
    plus per-channel sum and sum-of-squares of y (for BatchNorm batch stats)."""
    M, K = x.shape
    Kw, C = w_bf16.shape
    assert K == Kw and M % 8 == 0
    fuse = scale is not None

    # TODO(synk): add K/N tiling (grid axes + f32 VMEM accumulator) for real ResNet channel
    # counts (K=9*256, N=2048); at these shapes the full weight block comfortably fits VMEM.
    tm = _pick_tm(M, bytes_per_row=K * x.dtype.itemsize + C * 4, fixed_bytes=2 * K * C * 2)
    assert tm % 8 == 0
    grid_m = M // tm

    in_specs = [pl.BlockSpec((tm, K), lambda i: (i, 0)),
                pl.BlockSpec((K, C), lambda i: (0, 0))]
    args = [x, w_bf16]
    if fuse:
        in_specs += [pl.BlockSpec((1, K), lambda i: (0, 0)),
                     pl.BlockSpec((1, K), lambda i: (0, 0))]
        args += [scale, bias]

    y, psum, pssq = pl.pallas_call(
        functools.partial(mm_stats_kernel, fuse_bn_relu=fuse),
        out_shape=(jax.ShapeDtypeStruct((M, C), jnp.float32),
                   jax.ShapeDtypeStruct((grid_m, 8, C), jnp.float32),
                   jax.ShapeDtypeStruct((grid_m, 8, C), jnp.float32)),
        grid=(grid_m,),
        in_specs=in_specs,
        out_specs=(pl.BlockSpec((tm, C), lambda i: (i, 0)),
                   pl.BlockSpec((1, 8, C), lambda i: (i, 0, 0)),
                   pl.BlockSpec((1, 8, C), lambda i: (i, 0, 0))),
        compiler_params=pltpu.CompilerParams(dimension_semantics=("parallel",)),
    )(*args)
    return y, jnp.sum(psum, axis=(0, 1)), jnp.sum(pssq, axis=(0, 1))


def pallas_conv3x3_bn_stats(y1_nhwc, w2_bf16, scale1, bias1, stride):
    """Fused (bn1+relu) -> 3x3 conv (pad=1, stride) -> BN2 batch-stat partials."""
    N, H, W, C1 = y1_nhwc.shape
    C2 = w2_bf16.shape[-1]
    Ho = (H + 2 - 3) // stride + 1
    Wo = (W + 2 - 3) // stride + 1
    assert (Ho * Wo) % 8 == 0

    kernel = functools.partial(conv3x3_kernel, H=H, W=W, Ho=Ho, Wo=Wo, stride=stride)
    y2, psum, pssq = pl.pallas_call(
        kernel,
        out_shape=(jax.ShapeDtypeStruct((N, Ho, Wo, C2), jnp.float32),
                   jax.ShapeDtypeStruct((N, 8, C2), jnp.float32),
                   jax.ShapeDtypeStruct((N, 8, C2), jnp.float32)),
        grid=(N,),
        in_specs=[pl.BlockSpec((1, H, W, C1), lambda n: (n, 0, 0, 0)),
                  pl.BlockSpec((9, C1, C2), lambda n: (0, 0, 0)),
                  pl.BlockSpec((1, C1), lambda n: (0, 0)),
                  pl.BlockSpec((1, C1), lambda n: (0, 0))],
        out_specs=(pl.BlockSpec((1, Ho, Wo, C2), lambda n: (n, 0, 0, 0)),
                   pl.BlockSpec((1, 8, C2), lambda n: (n, 0, 0)),
                   pl.BlockSpec((1, 8, C2), lambda n: (n, 0, 0))),
        scratch_shapes=[pltpu.VMEM((H + 2, W + 2, C1), jnp.float32)],
        compiler_params=pltpu.CompilerParams(dimension_semantics=("parallel",)),
    )(y1_nhwc, w2_bf16, scale1, bias1)
    return y2, jnp.sum(psum, axis=(0, 1)), jnp.sum(pssq, axis=(0, 1))


def _bn_add_relu_call(x, s, b, r, rs, rb):
    M, C = x.shape
    tm = _pick_tm(M, bytes_per_row=3 * C * 4)
    return pl.pallas_call(
        bn_add_relu_kernel,
        out_shape=jax.ShapeDtypeStruct((M, C), jnp.float32),
        grid=(M // tm,),
        in_specs=[pl.BlockSpec((tm, C), lambda i: (i, 0)),
                  pl.BlockSpec((1, C), lambda i: (0, 0)),
                  pl.BlockSpec((1, C), lambda i: (0, 0)),
                  pl.BlockSpec((tm, C), lambda i: (i, 0)),
                  pl.BlockSpec((1, C), lambda i: (0, 0)),
                  pl.BlockSpec((1, C), lambda i: (0, 0))],
        out_specs=pl.BlockSpec((tm, C), lambda i: (i, 0)),
        compiler_params=pltpu.CompilerParams(dimension_semantics=("parallel",)),
    )(x, s, b, r, rs, rb)


def pallas_bn_add_relu(x, scale, bias, r, rscale, rbias):
    M, C = x.shape
    if C < 128 and 128 % C == 0 and (M * C) % 128 == 0:
        # Lane-dense view: avoids masked partial stores when C < 128 lanes.
        rep = 128 // C
        Mf = (M * C) // 128
        out = _bn_add_relu_call(
            x.reshape(Mf, 128), jnp.tile(scale, (1, rep)), jnp.tile(bias, (1, rep)),
            r.reshape(Mf, 128), jnp.tile(rscale, (1, rep)), jnp.tile(rbias, (1, rep)))
        return out.reshape(M, C)
    return _bn_add_relu_call(x, scale, bias, r, rscale, rbias)


# --------------------------------- glue (JAX) ---------------------------------

def bn_scale_bias(s, ssq, count, gamma, beta):
    """Training-mode BatchNorm folded into per-channel scale/bias from fused sums."""
    mean = s / count
    var = ssq / count - mean * mean          # biased variance (PyTorch forward, training)
    scale = gamma * jax.lax.rsqrt(var + EPS)
    bias = beta - mean * scale
    return scale[None, :], bias[None, :]


def bottleneck_forward(x_nchw, params, stride=1):
    x = jnp.transpose(x_nchw, (0, 2, 3, 1)).astype(jnp.float32)   # NHWC
    N, H, W, Cin = x.shape
    M = N * H * W
    xf = x.reshape(M, Cin)

    C1 = params["w1"].shape[1]
    Cout = params["w3"].shape[1]
    w1 = params["w1"].astype(jnp.bfloat16)
    w2 = params["w2"].reshape(9, C1, C1).astype(jnp.bfloat16)     # (kh,kw) tap-major
    w3 = params["w3"].astype(jnp.bfloat16)

    # conv1 (1x1) + fused BN1 batch-stat epilogue
    y1, s1, q1 = pallas_matmul_stats(xf.astype(jnp.bfloat16), w1)
    sc1, bi1 = bn_scale_bias(s1, q1, M, params["g1"], params["bt1"])

    # conv2 (3x3): bn1+relu fused into the input load, halo built in VMEM (no im2col in HBM),
    # BN2 batch-stats fused as epilogue
    y2, s2, q2 = pallas_conv3x3_bn_stats(y1.reshape(N, H, W, C1), w2, sc1, bi1, stride)
    _, Ho, Wo, _ = y2.shape
    M2 = N * Ho * Wo
    sc2, bi2 = bn_scale_bias(s2, q2, M2, params["g2"], params["bt2"])

    # conv3 (1x1): bn2+relu fused into the input, BN3 batch-stats fused as epilogue
    y3, s3, q3 = pallas_matmul_stats(y2.reshape(M2, C1), w3, sc2, bi2)
    sc3, bi3 = bn_scale_bias(s3, q3, M2, params["g3"], params["bt3"])

    # shortcut branch (1x1 strided conv + BN, or identity)
    if "wsc" in params:
        xs = x[:, ::stride, ::stride, :].reshape(M2, Cin)
        r, ssc, qsc = pallas_matmul_stats(xs.astype(jnp.bfloat16),
                                          params["wsc"].astype(jnp.bfloat16))
        scs, bis = bn_scale_bias(ssc, qsc, M2, params["gsc"], params["btsc"])
    else:
        r = xf
        scs = jnp.ones((1, Cout), jnp.float32)
        bis = jnp.zeros((1, Cout), jnp.float32)

    out = pallas_bn_add_relu(y3, sc3, bi3, r, scs, bis)
    return jnp.transpose(out.reshape(N, Ho, Wo, Cout), (0, 3, 1, 2))   # back to NCHW


# --------------------------------- reference (JAX) ---------------------------------

def im2col_3x3(x_nhwc, stride):
    N, H, W, C = x_nhwc.shape
    xp = jnp.pad(x_nhwc, ((0, 0), (1, 1), (1, 1), (0, 0)))
    Ho = (H + 2 - 3) // stride + 1
    Wo = (W + 2 - 3) // stride + 1
    cols = []
    for kh in range(3):
        for kw in range(3):
            cols.append(xp[:, kh:kh + stride * Ho:stride,
                           kw:kw + stride * Wo:stride, :])
    return jnp.concatenate(cols, axis=-1)


def ref_forward(x_nchw, params, stride=1):
    x = jnp.transpose(x_nchw, (0, 2, 3, 1)).astype(jnp.float32)
    N, H, W, Cin = x.shape
    xf = x.reshape(-1, Cin)

    def bn(y, g, b):
        m = y.mean(0)
        v = ((y - m) ** 2).mean(0)
        return (y - m) / jnp.sqrt(v + EPS) * g + b

    def mm(a, w):   # same bf16-operand / f32-accumulation rounding as the Pallas kernels
        return jnp.dot(a.astype(jnp.bfloat16), w.astype(jnp.bfloat16),
                       preferred_element_type=jnp.float32)

    C1 = params["w1"].shape[1]
    y1 = mm(xf, params["w1"])
    a1 = jnp.maximum(bn(y1, params["g1"], params["bt1"]), 0.0)
    p = im2col_3x3(a1.reshape(N, H, W, C1), stride)
    Ho, Wo = p.shape[1:3]
    y2 = mm(p.reshape(N * Ho * Wo, 9 * C1), params["w2"].reshape(9 * C1, -1))
    a2 = jnp.maximum(bn(y2, params["g2"], params["bt2"]), 0.0)
    y3 = bn(mm(a2, params["w3"]), params["g3"], params["bt3"])
    if "wsc" in params:
        xs = x[:, ::stride, ::stride, :].reshape(-1, Cin)
        rr = bn(mm(xs, params["wsc"]), params["gsc"], params["btsc"])
    else:
        rr = xf
    out = jnp.maximum(y3 + rr, 0.0)
    Cout = params["w3"].shape[1]
    return jnp.transpose(out.reshape(N, Ho, Wo, Cout), (0, 3, 1, 2))


# --------------------------------- main ---------------------------------

def make_params(key, in_channels, channels, stride, expansion=4):
    ks = jax.random.split(key, 12)
    Cout = channels * expansion
    params = {
        "w1": 0.2 * jax.random.normal(ks[0], (in_channels, channels), jnp.float32),
        "g1": 1.0 + 0.1 * jax.random.normal(ks[1], (channels,), jnp.float32),
        "bt1": 0.1 * jax.random.normal(ks[2], (channels,), jnp.float32),
        "w2": 0.2 * jax.random.normal(ks[3], (3, 3, channels, channels), jnp.float32),
        "g2": 1.0 + 0.1 * jax.random.normal(ks[4], (channels,), jnp.float32),
        "bt2": 0.1 * jax.random.normal(ks[5], (channels,), jnp.float32),
        "w3": 0.2 * jax.random.normal(ks[6], (channels, Cout), jnp.float32),
        "g3": 1.0 + 0.1 * jax.random.normal(ks[7], (Cout,), jnp.float32),
        "bt3": 0.1 * jax.random.normal(ks[8], (Cout,), jnp.float32),
    }
    if stride != 1 or in_channels != Cout:
        params["wsc"] = 0.2 * jax.random.normal(ks[9], (in_channels, Cout), jnp.float32)
        params["gsc"] = 1.0 + 0.1 * jax.random.normal(ks[10], (Cout,), jnp.float32)
        params["btsc"] = 0.1 * jax.random.normal(ks[11], (Cout,), jnp.float32)
    return params


if __name__ == "__main__":
    key = jax.random.PRNGKey(0)
    k_x, k_p = jax.random.split(key)

    # BottleneckBlock(in_channels=4, channels=4, stride=1) -> out channels = 16
    N, Cin, H, W = 2, 4, 16, 16
    channels, stride = 4, 1

    x = jax.random.normal(k_x, (N, Cin, H, W), jnp.float32)
    params = make_params(k_p, Cin, channels, stride)

    out = jax.block_until_ready(bottleneck_forward(x, params, stride=stride))
    ref = jax.block_until_ready(ref_forward(x, params, stride=stride))

    assert out.shape == (N, channels * 4, H, W), out.shape
    # Kernel and reference use the same bf16 matmul-operand rounding; the remaining drift
    # comes from accumulation order / BN-form differences amplified through the bf16 casts.
    err = float(jnp.max(jnp.abs(out - ref)))
    assert jnp.allclose(out, ref, rtol=1e-2, atol=1e-2), err

    print("KERNEL_OK")
</pallas_src>

<mosaic_0001>
module attributes {stable_mosaic.version = 11 : i64} {
  func.func @mm_stats_kernel(%arg0: i32, %arg1: memref<512x4xbf16, #tpu.memory_space<vmem>>, %arg2: memref<4x4xbf16, #tpu.memory_space<vmem>>, %arg3: memref<512x4xf32, #tpu.memory_space<vmem>>, %arg4: memref<1x8x4xf32, #tpu.memory_space<vmem>>, %arg5: memref<1x8x4xf32, #tpu.memory_space<vmem>>) attributes {dimension_semantics = [#tpu.dimension_semantics<parallel>], iteration_bounds = array<i64: 1>, scalar_prefetch = 0 : i64, scratch_operands = 0 : i64, tpu.core_type = #tpu.core_type<tc>, window_params = [{transform_indices = @transform_0, window_bounds = array<i64: 512, 4>}, {pipeline_mode = #tpu.pipeline_mode<synchronous>, transform_indices = @transform_1, window_bounds = array<i64: 4, 4>}, {transform_indices = @transform_2, window_bounds = array<i64: 512, 4>}, {transform_indices = @transform_3, window_bounds = array<i64: 1, 8, 4>}, {transform_indices = @transform_4, window_bounds = array<i64: 1, 8, 4>}]} {
    %c0 = arith.constant 0 : index
    %c0_0 = arith.constant 0 : index
    %0 = vector.load %arg1[%c0, %c0_0] : memref<512x4xbf16, #tpu.memory_space<vmem>>, vector<512x4xbf16>
    %c0_1 = arith.constant 0 : index
    %c0_2 = arith.constant 0 : index
    %1 = vector.load %arg2[%c0_1, %c0_2] : memref<4x4xbf16, #tpu.memory_space<vmem>>, vector<4x4xbf16>
    %cst = arith.constant dense<0.000000e+00> : vector<512x4xf32>
    %2 = tpu.matmul %0, %1, %cst {dimension_numbers = #tpu.dot_dimension_numbers<[1], [0], [0], [1], [0, 0, 1, 1], [], []>} : vector<512x4xbf16>, vector<4x4xbf16>, vector<512x4xf32> -> vector<512x4xf32>
    %c0_3 = arith.constant 0 : index
    %c0_4 = arith.constant 0 : index
    %3 = vector.load %arg3[%c0_3, %c0_4] : memref<512x4xf32, #tpu.memory_space<vmem>>, vector<512x4xf32>
    tpu.vector_store %arg3[%c0_3, %c0_4], %2 {strides = array<i32>} : memref<512x4xf32, #tpu.memory_space<vmem>>, vector<512x4xf32>,
    %4 = vector.shape_cast %2 : vector<512x4xf32> to vector<64x8x4xf32>
    %cst_5 = arith.constant dense<0.000000e+00> : vector<8x4xf32>
    %5 = vector.multi_reduction <add>, %4, %cst_5 [0] : vector<64x8x4xf32> to vector<8x4xf32>
    %c0_6 = arith.constant 0 : index
    %c0_7 = arith.constant 0 : index
    %c0_8 = arith.constant 0 : index
    %6 = vector.load %arg4[%c0_6, %c0_7, %c0_8] : memref<1x8x4xf32, #tpu.memory_space<vmem>>, vector<1x8x4xf32>
    %7 = vector.shape_cast %6 : vector<1x8x4xf32> to vector<8x4xf32>
    %8 = vector.shape_cast %5 : vector<8x4xf32> to vector<1x8x4xf32>
    tpu.vector_store %arg4[%c0_6, %c0_7, %c0_8], %8 {strides = array<i32>} : memref<1x8x4xf32, #tpu.memory_space<vmem>>, vector<1x8x4xf32>,
    %9 = arith.mulf %4, %4 : vector<64x8x4xf32>
    %cst_9 = arith.constant dense<0.000000e+00> : vector<8x4xf32>
    %10 = vector.multi_reduction <add>, %9, %cst_9 [0] : vector<64x8x4xf32> to vector<8x4xf32>
    %c0_10 = arith.constant 0 : index
    %c0_11 = arith.constant 0 : index
    %c0_12 = arith.constant 0 : index
    %11 = vector.load %arg5[%c0_10, %c0_11, %c0_12] : memref<1x8x4xf32, #tpu.memory_space<vmem>>, vector<1x8x4xf32>
    %12 = vector.shape_cast %11 : vector<1x8x4xf32> to vector<8x4xf32>
    %13 = vector.shape_cast %10 : vector<8x4xf32> to vector<1x8x4xf32>
    tpu.vector_store %arg5[%c0_10, %c0_11, %c0_12], %13 {strides = array<i32>} : memref<1x8x4xf32, #tpu.memory_space<vmem>>, vector<1x8x4xf32>,
    return
  }
  func.func @transform_0(%arg0: i32) -> (i32, i32) {
    %c0_i32 = arith.constant 0 : i32
    %c0_i32_0 = arith.constant 0 : i32
    return %arg0, %c0_i32 : i32, i32
  }
  func.func @transform_1(%arg0: i32) -> (i32, i32) {
    %c0_i32 = arith.constant 0 : i32
    %c0_i32_0 = arith.constant 0 : i32
    %c0_i32_1 = arith.constant 0 : i32
    return %c0_i32, %c0_i32_0 : i32, i32
  }
  func.func @transform_2(%arg0: i32) -> (i32, i32) {
    %c0_i32 = arith.constant 0 : i32
    %c0_i32_0 = arith.constant 0 : i32
    return %arg0, %c0_i32 : i32, i32
  }
  func.func @transform_3(%arg0: i32) -> (i32, i32, i32) {
    %c0_i32 = arith.constant 0 : i32
    %c0_i32_0 = arith.constant 0 : i32
    %c0_i32_1 = arith.constant 0 : i32
    return %arg0, %c0_i32, %c0_i32_0 : i32, i32, i32
  }
  func.func @transform_4(%arg0: i32) -> (i32, i32, i32) {
    %c0_i32 = arith.constant 0 : i32
    %c0_i32_0 = arith.constant 0 : i32
    %c0_i32_1 = arith.constant 0 : i32
    return %arg0, %c0_i32, %c0_i32_0 : i32, i32, i32
  }
}

</mosaic_0001>

<llo_original>
// kernel: tpu_custom_call.1
$region0: #{tpu_custom_call.1}
  #allocation0 [shape = 'u32[]', space=smem, size = 0x4, offset = 0x4, fixed_abs, tag = 'smem constant byte address 0x4 - core index']
  #allocation1 [shape = 'u32[72,128]{1,0:T(1,128)}', space=vmem, size = 0x9000, scoped, tag = 'internal scratch']
  %s0 = inlined_call_operand.vmem [shape: bf16[512,4], index: 0, kind: input, shape index: {}]
  %s1 = inlined_call_operand.vmem [shape: bf16[4,4], index: 1, kind: input, shape index: {}]
  %s2 = inlined_call_operand.vmem [shape: f32[512,4], index: 2, kind: output, shape index: {0}]
  %s3 = inlined_call_operand.vmem [shape: f32[1,8,4], index: 3, kind: output, shape index: {1}]
  %s4 = inlined_call_operand.vmem [shape: f32[1,8,4], index: 4, kind: output, shape index: {2}]
  %5 = xla_tuple %s2, %s3, %s4
  %s6 = sld [smem:[#allocation0]]
  $region34: #{tpu_custom_call.1} parent=0
    _
  %s8 = ssub.s32 1, %s6
  %s9 = scalar_select 0, %s8, %s6
  // Predicated region
  $region2: #{tpu_custom_call.1} parent=0 // pred_check
    _
  $region3: #{tpu_custom_call.1} parent=0 // pred_check_branch
    %11 = sbr.rel (0) target = $region5
  $region4: #{tpu_custom_call.1} parent=0 // pred_region
    _
  $region5: #{tpu_custom_call.1} parent=0 // pred_fallthru
    _
  // Predicated region
  $region6: #{tpu_custom_call.1} parent=0 // pred_check
    _
  $region7: #{tpu_custom_call.1} parent=0 // pred_check_branch
    %13 = sbr.rel (0) target = $region9
  $region8: #{tpu_custom_call.1} parent=0 // pred_region
    _
  $region9: #{tpu_custom_call.1} parent=0 // pred_fallthru
    _
  %v15 = vld [vmem:[%s0] sm:$0xf]
  %v16 = vld [vmem:[%s0 + $0x4] sm:$0xf]
  %v17 = vld [vmem:[%s0 + $0x8] sm:$0xf]
  %v18 = vld [vmem:[%s0 + $0xc] sm:$0xf]
  %v19 = vld [vmem:[%s0 + $0x10] sm:$0xf]
  %v20 = vld [vmem:[%s0 + $0x14] sm:$0xf]
  %v21 = vld [vmem:[%s0 + $0x18] sm:$0xf]
  %v22 = vld [vmem:[%s0 + $0x1c] sm:$0xf]
  %v23 = vld [vmem:[%s0 + $0x20] sm:$0xf]
  %v24 = vld [vmem:[%s0 + $0x24] sm:$0xf]
  %v25 = vld [vmem:[%s0 + $0x28] sm:$0xf]
  %v26 = vld [vmem:[%s0 + $0x2c] sm:$0xf]
  %v27 = vld [vmem:[%s0 + $0x30] sm:$0xf]
  %v28 = vld [vmem:[%s0 + $0x34] sm:$0xf]
  %v29 = vld [vmem:[%s0 + $0x38] sm:$0xf]
  %v30 = vld [vmem:[%s0 + $0x3c] sm:$0xf]
  %v31 = vld [vmem:[%s0 + $0x40] sm:$0xf]
  %v32 = vld [vmem:[%s0 + $0x44] sm:$0xf]
  %v33 = vld [vmem:[%s0 + $0x48] sm:$0xf]
  %v34 = vld [vmem:[%s0 + $0x4c] sm:$0xf]
  %v35 = vld [vmem:[%s0 + $0x50] sm:$0xf]
  %v36 = vld [vmem:[%s0 + $0x54] sm:$0xf]
  %v37 = vld [vmem:[%s0 + $0x58] sm:$0xf]
  %v38 = vld [vmem:[%s0 + $0x5c] sm:$0xf]
  %v39 = vld [vmem:[%s0 + $0x60] sm:$0xf]
  %v40 = vld [vmem:[%s0 + $0x64] sm:$0xf]
  %v41 = vld [vmem:[%s0 + $0x68] sm:$0xf]
  %v42 = vld [vmem:[%s0 + $0x6c] sm:$0xf]
  %v43 = vld [vmem:[%s0 + $0x70] sm:$0xf]
  %v44 = vld [vmem:[%s0 + $0x74] sm:$0xf]
  %v45 = vld [vmem:[%s0 + $0x78] sm:$0xf]
  %v46 = vld [vmem:[%s0 + $0x7c] sm:$0xf]
  %v47 = vld [vmem:[%s0 + $0x80] sm:$0xf]
  %v48 = vld [vmem:[%s0 + $0x84] sm:$0xf]
  %v49 = vld [vmem:[%s0 + $0x88] sm:$0xf]
  %v50 = vld [vmem:[%s0 + $0x8c] sm:$0xf]
  %v51 = vld [vmem:[%s0 + $0x90] sm:$0xf]
  %v52 = vld [vmem:[%s0 + $0x94] sm:$0xf]
  %v53 = vld [vmem:[%s0 + $0x98] sm:$0xf]
  %v54 = vld [vmem:[%s0 + $0x9c] sm:$0xf]
  %v55 = vld [vmem:[%s0 + $0xa0] sm:$0xf]
  %v56 = vld [vmem:[%s0 + $0xa4] sm:$0xf]
  %v57 = vld [vmem:[%s0 + $0xa8] sm:$0xf]
  %v58 = vld [vmem:[%s0 + $0xac] sm:$0xf]
  %v59 = vld [vmem:[%s0 + $0xb0] sm:$0xf]
  %v60 = vld [vmem:[%s0 + $0xb4] sm:$0xf]
  %v61 = vld [vmem:[%s0 + $0xb8] sm:$0xf]
  %v62 = vld [vmem:[%s0 + $0xbc] sm:$0xf]
  %v63 = vld [vmem:[%s0 + $0xc0] sm:$0xf]
  %v64 = vld [vmem:[%s0 + $0xc4] sm:$0xf]
  %v65 = vld [vmem:[%s0 + $0xc8] sm:$0xf]
  %v66 = vld [vmem:[%s0 + $0xcc] sm:$0xf]
  %v67 = vld [vmem:[%s0 + $0xd0] sm:$0xf]
  %v68 = vld [vmem:[%s0 + $0xd4] sm:$0xf]
  %v69 = vld [vmem:[%s0 + $0xd8] sm:$0xf]
  %v70 = vld [vmem:[%s0 + $0xdc] sm:$0xf]
  %v71 = vld [vmem:[%s0 + $0xe0] sm:$0xf]
  %v72 = vld [vmem:[%s0 + $0xe4] sm:$0xf]
  %v73 = vld [vmem:[%s0 + $0xe8] sm:$0xf]
  %v74 = vld [vmem:[%s0 + $0xec] sm:$0xf]
  %v75 = vld [vmem:[%s0 + $0xf0] sm:$0xf]
  %v76 = vld [vmem:[%s0 + $0xf4] sm:$0xf]
  %v77 = vld [vmem:[%s0 + $0xf8] sm:$0xf]
  %v78 = vld [vmem:[%s0 + $0xfc] sm:$0xf]
  %v79 = vld [vmem:[%s1] sm:$0x3]
  %v144 = vunpack.c.l.b16 %v15
  %v145 = vunpack.c.l.b16 %v16
  %v146 = vunpack.c.l.b16 %v17
  %v147 = vunpack.c.l.b16 %v18
  %v148 = vunpack.c.l.b16 %v19
  %v149 = vunpack.c.l.b16 %v20
  %v150 = vunpack.c.l.b16 %v21
  %v151 = vunpack.c.l.b16 %v22
  %v152 = vunpack.c.l.b16 %v23
  %v153 = vunpack.c.l.b16 %v24
  %v154 = vunpack.c.l.b16 %v25
  %v155 = vunpack.c.l.b16 %v26
  %v156 = vunpack.c.l.b16 %v27
  %v157 = vunpack.c.l.b16 %v28
  %v158 = vunpack.c.l.b16 %v29
  %v159 = vunpack.c.l.b16 %v30
  %v160 = vunpack.c.l.b16 %v31
  %v161 = vunpack.c.l.b16 %v32
  %v162 = vunpack.c.l.b16 %v33
  %v163 = vunpack.c.l.b16 %v34
  %v164 = vunpack.c.l.b16 %v35
  %v165 = vunpack.c.l.b16 %v36
  %v166 = vunpack.c.l.b16 %v37
  %v167 = vunpack.c.l.b16 %v38
  %v168 = vunpack.c.l.b16 %v39
  %v169 = vunpack.c.l.b16 %v40
  %v170 = vunpack.c.l.b16 %v41
  %v171 = vunpack.c.l.b16 %v42
  %v172 = vunpack.c.l.b16 %v43
  %v173 = vunpack.c.l.b16 %v44
  %v174 = vunpack.c.l.b16 %v45
  %v175 = vunpack.c.l.b16 %v46
  %v176 = vunpack.c.l.b16 %v47
  %v177 = vunpack.c.l.b16 %v48
  %v178 = vunpack.c.l.b16 %v49
  %v179 = vunpack.c.l.b16 %v50
  %v180 = vunpack.c.l.b16 %v51
  %v181 = vunpack.c.l.b16 %v52
  %v182 = vunpack.c.l.b16 %v53
  %v183 = vunpack.c.l.b16 %v54
  %v184 = vunpack.c.l.b16 %v55
  %v185 = vunpack.c.l.b16 %v56
  %v186 = vunpack.c.l.b16 %v57
  %v187 = vunpack.c.l.b16 %v58
  %v188 = vunpack.c.l.b16 %v59
  %v189 = vunpack.c.l.b16 %v60
  %v190 = vunpack.c.l.b16 %v61
  %v191 = vunpack.c.l.b16 %v62
  %v192 = vunpack.c.l.b16 %v63
  %v193 = vunpack.c.l.b16 %v64
  %v194 = vunpack.c.l.b16 %v65
  %v195 = vunpack.c.l.b16 %v66
  %v196 = vunpack.c.l.b16 %v67
  %v197 = vunpack.c.l.b16 %v68
  %v198 = vunpack.c.l.b16 %v69
  %v199 = vunpack.c.l.b16 %v70
  %v200 = vunpack.c.l.b16 %v71
  %v201 = vunpack.c.l.b16 %v72
  %v202 = vunpack.c.l.b16 %v73
  %v203 = vunpack.c.l.b16 %v74
  %v204 = vunpack.c.l.b16 %v75
  %v205 = vunpack.c.l.b16 %v76
  %v206 = vunpack.c.l.b16 %v77
  %v207 = vunpack.c.l.b16 %v78
  %v208 = vpack.c.b16 %v145, %v144
  %v209 = vpack.c.b16 %v147, %v146
  %v210 = vpack.c.b16 %v149, %v148
  %v211 = vpack.c.b16 %v151, %v150
  %v212 = vpack.c.b16 %v153, %v152
  %v213 = vpack.c.b16 %v155, %v154
  %v214 = vpack.c.b16 %v157, %v156
  %v215 = vpack.c.b16 %v159, %v158
  %v216 = vpack.c.b16 %v161, %v160
  %v217 = vpack.c.b16 %v163, %v162
  %v218 = vpack.c.b16 %v165, %v164
  %v219 = vpack.c.b16 %v167, %v166
  %v220 = vpack.c.b16 %v169, %v168
  %v221 = vpack.c.b16 %v171, %v170
  %v222 = vpack.c.b16 %v173, %v172
  %v223 = vpack.c.b16 %v175, %v174
  %v224 = vpack.c.b16 %v177, %v176
  %v225 = vpack.c.b16 %v179, %v178
  %v226 = vpack.c.b16 %v181, %v180
  %v227 = vpack.c.b16 %v183, %v182
  %v228 = vpack.c.b16 %v185, %v184
  %v229 = vpack.c.b16 %v187, %v186
  %v230 = vpack.c.b16 %v189, %v188
  %v231 = vpack.c.b16 %v191, %v190
  %v232 = vpack.c.b16 %v193, %v192
  %v233 = vpack.c.b16 %v195, %v194
  %v234 = vpack.c.b16 %v197, %v196
  %v235 = vpack.c.b16 %v199, %v198
  %v236 = vpack.c.b16 %v201, %v200
  %v237 = vpack.c.b16 %v203, %v202
  %v238 = vpack.c.b16 %v205, %v204
  %v239 = vpack.c.b16 %v207, %v206
  %vm240 = vcmask 31744
  %v242 = vsel %vm240, %v208, 0
  %v245 = vsel %vm240, %v209, 0
  %v248 = vsel %vm240, %v210, 0
  %v251 = vsel %vm240, %v211, 0
  %v254 = vsel %vm240, %v212, 0
  %v257 = vsel %vm240, %v213, 0
  %v260 = vsel %vm240, %v214, 0
  %v263 = vsel %vm240, %v215, 0
  %v266 = vsel %vm240, %v216, 0
  %v269 = vsel %vm240, %v217, 0
  %v272 = vsel %vm240, %v218, 0
  %v275 = vsel %vm240, %v219, 0
  %v278 = vsel %vm240, %v220, 0
  %v281 = vsel %vm240, %v221, 0
  %v284 = vsel %vm240, %v222, 0
  %v287 = vsel %vm240, %v223, 0
  %v290 = vsel %vm240, %v224, 0
  %v293 = vsel %vm240, %v225, 0
  %v296 = vsel %vm240, %v226, 0
  %v299 = vsel %vm240, %v227, 0
  %v302 = vsel %vm240, %v228, 0
  %v305 = vsel %vm240, %v229, 0
  %v308 = vsel %vm240, %v230, 0
  %v311 = vsel %vm240, %v231, 0
  %v314 = vsel %vm240, %v232, 0
  %v317 = vsel %vm240, %v233, 0
  %v320 = vsel %vm240, %v234, 0
  %v323 = vsel %vm240, %v235, 0
  %v326 = vsel %vm240, %v236, 0
  %v329 = vsel %vm240, %v237, 0
  %v332 = vsel %vm240, %v238, 0
  %v335 = vsel %vm240, %v239, 0
  %vm337 = vcmask 1041408
  %v339 = vsel %vm337, %v79, 0
  %341 = vmatpush.bf16.msra.mxu0 0
  %342 = vmatpush.bf16.msra.mxu0 0
  %343 = vmatpush.bf16.msra.mxu0 0
  %344 = vmatpush.bf16.msra.mxu0 0
  %345 = vmatpush.bf16.msra.mxu0 0
  %346 = vmatpush.bf16.msra.mxu0 0
  %347 = vmatpush.bf16.msra.mxu0 0
  %348 = vmatpush.bf16.msra.mxu0 %v339
  %349 = vmatmul.bf16.gmra.mxu0 %v242
  %v350 = vpop.f32.mrf.mxu0
  %v351 = vadd.f32 0.0, %v350
  %v352 = vpop.f32.mrf.mxu0
  %v353 = vadd.f32 0.0, %v352
  %354 = vmatmul.bf16.gmra.mxu0 %v245
  %v355 = vpop.f32.mrf.mxu0
  %v356 = vadd.f32 0.0, %v355
  %v357 = vpop.f32.mrf.mxu0
  %v358 = vadd.f32 0.0, %v357
  %359 = vmatmul.bf16.gmra.mxu0 %v248
  %v360 = vpop.f32.mrf.mxu0
  %v361 = vadd.f32 0.0, %v360
  %v362 = vpop.f32.mrf.mxu0
  %v363 = vadd.f32 0.0, %v362
  %364 = vmatmul.bf16.gmra.mxu0 %v251
  %v365 = vpop.f32.mrf.mxu0
  %v366 = vadd.f32 0.0, %v365
  %v367 = vpop.f32.mrf.mxu0
  %v368 = vadd.f32 0.0, %v367
  %369 = vmatmul.bf16.gmra.mxu0 %v254
  %v370 = vpop.f32.mrf.mxu0
  %v371 = vadd.f32 0.0, %v370
  %v372 = vpop.f32.mrf.mxu0
  %v373 = vadd.f32 0.0, %v372
  %374 = vmatmul.bf16.gmra.mxu0 %v257
  %v375 = vpop.f32.mrf.mxu0
  %v376 = vadd.f32 0.0, %v375
  %v377 = vpop.f32.mrf.mxu0
  %v378 = vadd.f32 0.0, %v377
  %379 = vmatmul.bf16.gmra.mxu0 %v260
  %v380 = vpop.f32.mrf.mxu0
  %v381 = vadd.f32 0.0, %v380
  %v382 = vpop.f32.mrf.mxu0
  %v383 = vadd.f32 0.0, %v382
  %384 = vmatmul.bf16.gmra.mxu0 %v263
  %v385 = vpop.f32.mrf.mxu0
  %v386 = vadd.f32 0.0, %v385
  %v387 = vpop.f32.mrf.mxu0
  %v388 = vadd.f32 0.0, %v387
  %389 = vmatmul.bf16.gmra.mxu0 %v266
  %v390 = vpop.f32.mrf.mxu0
  %v391 = vadd.f32 0.0, %v390
  %v392 = vpop.f32.mrf.mxu0
  %v393 = vadd.f32 0.0, %v392
  %394 = vmatmul.bf16.gmra.mxu0 %v269
  %v395 = vpop.f32.mrf.mxu0
  %v396 = vadd.f32 0.0, %v395
  %v397 = vpop.f32.mrf.mxu0
  %v398 = vadd.f32 0.0, %v397
  %399 = vmatmul.bf16.gmra.mxu0 %v272
  %v400 = vpop.f32.mrf.mxu0
  %v401 = vadd.f32 0.0, %v400
  %v402 = vpop.f32.mrf.mxu0
  %v403 = vadd.f32 0.0, %v402
  %404 = vmatmul.bf16.gmra.mxu0 %v275
  %v405 = vpop.f32.mrf.mxu0
  %v406 = vadd.f32 0.0, %v405
  %v407 = vpop.f32.mrf.mxu0
  %v408 = vadd.f32 0.0, %v407
  %409 = vmatmul.bf16.gmra.mxu0 %v278
  %v410 = vpop.f32.mrf.mxu0
  %v411 = vadd.f32 0.0, %v410
  %v412 = vpop.f32.mrf.mxu0
  %v413 = vadd.f32 0.0, %v412
  %414 = vmatmul.bf16.gmra.mxu0 %v281
  %v415 = vpop.f32.mrf.mxu0
  %v416 = vadd.f32 0.0, %v415
  %v417 = vpop.f32.mrf.mxu0
  %v418 = vadd.f32 0.0, %v417
  %419 = vmatmul.bf16.gmra.mxu0 %v284
  %v420 = vpop.f32.mrf.mxu0
  %v421 = vadd.f32 0.0, %v420
  %v422 = vpop.f32.mrf.mxu0
  %v423 = vadd.f32 0.0, %v422
  %424 = vmatmul.bf16.gmra.mxu0 %v287
  %v425 = vpop.f32.mrf.mxu0
  %v426 = vadd.f32 0.0, %v425
  %v427 = vpop.f32.mrf.mxu0
  %v428 = vadd.f32 0.0, %v427
  %429 = vmatmul.bf16.gmra.mxu0 %v290
  %v430 = vpop.f32.mrf.mxu0
  %v431 = vadd.f32 0.0, %v430
  %v432 = vpop.f32.mrf.mxu0
  %v433 = vadd.f32 0.0, %v432
  %434 = vmatmul.bf16.gmra.mxu0 %v293
  %v435 = vpop.f32.mrf.mxu0
  %v436 = vadd.f32 0.0, %v435
  %v437 = vpop.f32.mrf.mxu0
  %v438 = vadd.f32 0.0, %v437
  %439 = vmatmul.bf16.gmra.mxu0 %v296
  %v440 = vpop.f32.mrf.mxu0
  %v441 = vadd.f32 0.0, %v440
  %v442 = vpop.f32.mrf.mxu0
  %v443 = vadd.f32 0.0, %v442
  %444 = vmatmul.bf16.gmra.mxu0 %v299
  %v445 = vpop.f32.mrf.mxu0
  %v446 = vadd.f32 0.0, %v445
  %v447 = vpop.f32.mrf.mxu0
  %v448 = vadd.f32 0.0, %v447
  %449 = vmatmul.bf16.gmra.mxu0 %v302
  %v450 = vpop.f32.mrf.mxu0
  %v451 = vadd.f32 0.0, %v450
  %v452 = vpop.f32.mrf.mxu0
  %v453 = vadd.f32 0.0, %v452
  %454 = vmatmul.bf16.gmra.mxu0 %v305
  %v455 = vpop.f32.mrf.mxu0
  %v456 = vadd.f32 0.0, %v455
  %v457 = vpop.f32.mrf.mxu0
  %v458 = vadd.f32 0.0, %v457
  %459 = vmatmul.bf16.gmra.mxu0 %v308
  %v460 = vpop.f32.mrf.mxu0
  %v461 = vadd.f32 0.0, %v460
  %v462 = vpop.f32.mrf.mxu0
  %v463 = vadd.f32 0.0, %v462
  %464 = vmatmul.bf16.gmra.mxu0 %v311
  %v465 = vpop.f32.mrf.mxu0
  %v466 = vadd.f32 0.0, %v465
  %v467 = vpop.f32.mrf.mxu0
  %v468 = vadd.f32 0.0, %v467
  %469 = vmatmul.bf16.gmra.mxu0 %v314
  %v470 = vpop.f32.mrf.mxu0
  %v471 = vadd.f32 0.0, %v470
  %v472 = vpop.f32.mrf.mxu0
  %v473 = vadd.f32 0.0, %v472
  %474 = vmatmul.bf16.gmra.mxu0 %v317
  %v475 = vpop.f32.mrf.mxu0
  %v476 = vadd.f32 0.0, %v475
  %v477 = vpop.f32.mrf.mxu0
  %v478 = vadd.f32 0.0, %v477
  %479 = vmatmul.bf16.gmra.mxu0 %v320
  %v480 = vpop.f32.mrf.mxu0
  %v481 = vadd.f32 0.0, %v480
  %v482 = vpop.f32.mrf.mxu0
  %v483 = vadd.f32 0.0, %v482
  %484 = vmatmul.bf16.gmra.mxu0 %v323
  %v485 = vpop.f32.mrf.mxu0
  %v486 = vadd.f32 0.0, %v485
  %v487 = vpop.f32.mrf.mxu0
  %v488 = vadd.f32 0.0, %v487
  %489 = vmatmul.bf16.gmra.mxu0 %v326
  %v490 = vpop.f32.mrf.mxu0
  %v491 = vadd.f32 0.0, %v490
  %v492 = vpop.f32.mrf.mxu0
  %v493 = vadd.f32 0.0, %v492
  %494 = vmatmul.bf16.gmra.mxu0 %v329
  %v495 = vpop.f32.mrf.mxu0
  %v496 = vadd.f32 0.0, %v495
  %v497 = vpop.f32.mrf.mxu0
  %v498 = vadd.f32 0.0, %v497
  %499 = vmatmul.bf16.gmra.mxu0 %v332
  %v500 = vpop.f32.mrf.mxu0
  %v501 = vadd.f32 0.0, %v500
  %v502 = vpop.f32.mrf.mxu0
  %v503 = vadd.f32 0.0, %v502
  %504 = vmatmul.bf16.gmra.mxu0 %v335
  %v505 = vpop.f32.mrf.mxu0
  %v506 = vadd.f32 0.0, %v505
  %v507 = vpop.f32.mrf.mxu0
  %v508 = vadd.f32 0.0, %v507
  %509 = vdwg.mxu0
  %510 = vst.msk [vmem:[%s2] sm:$0xff] %vm240, %v351
  %511 = vst.msk [vmem:[%s2 + $0x8] sm:$0xff] %vm240, %v353
  %512 = vst.msk [vmem:[%s2 + $0x10] sm:$0xff] %vm240, %v356
  %513 = vst.msk [vmem:[%s2 + $0x18] sm:$0xff] %vm240, %v358
  %514 = vst.msk [vmem:[%s2 + $0x20] sm:$0xff] %vm240, %v361
  %515 = vst.msk [vmem:[%s2 + $0x28] sm:$0xff] %vm240, %v363
  %516 = vst.msk [vmem:[%s2 + $0x30] sm:$0xff] %vm240, %v366
  %517 = vst.msk [vmem:[%s2 + $0x38] sm:$0xff] %vm240, %v368
  %518 = vst.msk [vmem:[%s2 + $0x40] sm:$0xff] %vm240, %v371
  %519 = vst.msk [vmem:[%s2 + $0x48] sm:$0xff] %vm240, %v373
  %520 = vst.msk [vmem:[%s2 + $0x50] sm:$0xff] %vm240, %v376
  %521 = vst.msk [vmem:[%s2 + $0x58] sm:$0xff] %vm240, %v378
  %522 = vst.msk [vmem:[%s2 + $0x60] sm:$0xff] %vm240, %v381
  %523 = vst.msk [vmem:[%s2 + $0x68] sm:$0xff] %vm240, %v383
  %524 = vst.msk [vmem:[%s2 + $0x70] sm:$0xff] %vm240, %v386
  %525 = vst.msk [vmem:[%s2 + $0x78] sm:$0xff] %vm240, %v388
  %526 = vst.msk [vmem:[%s2 + $0x80] sm:$0xff] %vm240, %v391
  %527 = vst.msk [vmem:[%s2 + $0x88] sm:$0xff] %vm240, %v393
  %528 = vst.msk [vmem:[%s2 + $0x90] sm:$0xff] %vm240, %v396
  %529 = vst.msk [vmem:[%s2 + $0x98] sm:$0xff] %vm240, %v398
  %530 = vst.msk [vmem:[%s2 + $0xa0] sm:$0xff] %vm240, %v401
  %531 = vst.msk [vmem:[%s2 + $0xa8] sm:$0xff] %vm240, %v403
  %532 = vst.msk [vmem:[%s2 + $0xb0] sm:$0xff] %vm240, %v406
  %533 = vst.msk [vmem:[%s2 + $0xb8] sm:$0xff] %vm240, %v408
  %534 = vst.msk [vmem:[%s2 + $0xc0] sm:$0xff] %vm240, %v411
  %535 = vst.msk [vmem:[%s2 + $0xc8] sm:$0xff] %vm240, %v413
  %536 = vst.msk [vmem:[%s2 + $0xd0] sm:$0xff] %vm240, %v416
  %537 = vst.msk [vmem:[%s2 + $0xd8] sm:$0xff] %vm240, %v418
  %538 = vst.msk [vmem:[%s2 + $0xe0] sm:$0xff] %vm240, %v421
  %539 = vst.msk [vmem:[%s2 + $0xe8] sm:$0xff] %vm240, %v423
  %540 = vst.msk [vmem:[%s2 + $0xf0] sm:$0xff] %vm240, %v426
  %541 = vst.msk [vmem:[%s2 + $0xf8] sm:$0xff] %vm240, %v428
  %542 = vst.msk [vmem:[%s2 + $0x100] sm:$0xff] %vm240, %v431
  %543 = vst.msk [vmem:[%s2 + $0x108] sm:$0xff] %vm240, %v433
  %544 = vst.msk [vmem:[%s2 + $0x110] sm:$0xff] %vm240, %v436
  %545 = vst.msk [vmem:[%s2 + $0x118] sm:$0xff] %vm240, %v438
  %546 = vst.msk [vmem:[%s2 + $0x120] sm:$0xff] %vm240, %v441
  %547 = vst.msk [vmem:[%s2 + $0x128] sm:$0xff] %vm240, %v443
  %548 = vst.msk [vmem:[%s2 + $0x130] sm:$0xff] %vm240, %v446
  %549 = vst.msk [vmem:[%s2 + $0x138] sm:$0xff] %vm240, %v448
  %550 = vst.msk [vmem:[%s2 + $0x140] sm:$0xff] %vm240, %v451
  %551 = vst.msk [vmem:[%s2 + $0x148] sm:$0xff] %vm240, %v453
  %552 = vst.msk [vmem:[%s2 + $0x150] sm:$0xff] %vm240, %v456
  %553 = vst.msk [vmem:[%s2 + $0x158] sm:$0xff] %vm240, %v458
  %554 = vst.msk [vmem:[%s2 + $0x160] sm:$0xff] %vm240, %v461
  %555 = vst.msk [vmem:[%s2 + $0x168] sm:$0xff] %vm240, %v463
  %556 = vst.msk [vmem:[%s2 + $0x170] sm:$0xff] %vm240, %v466
  %557 = vst.msk [vmem:[%s2 + $0x178] sm:$0xff] %vm240, %v468
  %558 = vst.msk [vmem:[%s2 + $0x180] sm:$0xff] %vm240, %v471
  %559 = vst.msk [vmem:[%s2 + $0x188] sm:$0xff] %vm240, %v473
  %560 = vst.msk [vmem:[%s2 + $0x190] sm:$0xff] %vm240, %v476
  %561 = vst.msk [vmem:[%s2 + $0x198] sm:$0xff] %vm240, %v478
  %562 = vst.msk [vmem:[%s2 + $0x1a0] sm:$0xff] %vm240, %v481
  %563 = vst.msk [vmem:[%s2 + $0x1a8] sm:$0xff] %vm240, %v483
  %564 = vst.msk [vmem:[%s2 + $0x1b0] sm:$0xff] %vm240, %v486
  %565 = vst.msk [vmem:[%s2 + $0x1b8] sm:$0xff] %vm240, %v488
  %566 = vst.msk [vmem:[%s2 + $0x1c0] sm:$0xff] %vm240, %v491
  %567 = vst.msk [vmem:[%s2 + $0x1c8] sm:$0xff] %vm240, %v493
  %568 = vst.msk [vmem:[%s2 + $0x1d0] sm:$0xff] %vm240, %v496
  %569 = vst.msk [vmem:[%s2 + $0x1d8] sm:$0xff] %vm240, %v498
  %570 = vst.msk [vmem:[%s2 + $0x1e0] sm:$0xff] %vm240, %v501
  %571 = vst.msk [vmem:[%s2 + $0x1e8] sm:$0xff] %vm240, %v503
  %572 = vst.msk [vmem:[%s2 + $0x1f0] sm:$0xff] %vm240, %v506
  %573 = vst.msk [vmem:[%s2 + $0x1f8] sm:$0xff] %vm240, %v508
  %v574 = vsel %vm240, %v351, 0.0
  %v575 = vsel %vm240, %v353, 0.0
  %v576 = vadd.f32 %v574, %v575
  %v577 = vsel %vm240, %v356, 0.0
  %v578 = vadd.f32 %v576, %v577
  %v579 = vsel %vm240, %v358, 0.0
  %v580 = vadd.f32 %v578, %v579
  %v581 = vsel %vm240, %v361, 0.0
  %v582 = vadd.f32 %v580, %v581
  %v583 = vsel %vm240, %v363, 0.0
  %v584 = vadd.f32 %v582, %v583
  %v585 = vsel %vm240, %v366, 0.0
  %v586 = vadd.f32 %v584, %v585
  %v587 = vsel %vm240, %v368, 0.0
  %v588 = vadd.f32 %v586, %v587
  %v589 = vsel %vm240, %v371, 0.0
  %v590 = vadd.f32 %v588, %v589
  %v591 = vsel %vm240, %v373, 0.0
  %v592 = vadd.f32 %v590, %v591
  %v593 = vsel %vm240, %v376, 0.0
  %v594 = vadd.f32 %v592, %v593
  %v595 = vsel %vm240, %v378, 0.0
  %v596 = vadd.f32 %v594, %v595
  %v597 = vsel %vm240, %v381, 0.0
  %v598 = vadd.f32 %v596, %v597
  %v599 = vsel %vm240, %v383, 0.0
  %v600 = vadd.f32 %v598, %v599
  %v601 = vsel %vm240, %v386, 0.0
  %v602 = vadd.f32 %v600, %v601
  %v603 = vsel %vm240, %v388, 0.0
  %v604 = vadd.f32 %v602, %v603
  %v605 = vsel %vm240, %v391, 0.0
  %v606 = vadd.f32 %v604, %v605
  %v607 = vsel %vm240, %v393, 0.0
  %v608 = vadd.f32 %v606, %v607
  %v609 = vsel %vm240, %v396, 0.0
  %v610 = vadd.f32 %v608, %v609
  %v611 = vsel %vm240, %v398, 0.0
  %v612 = vadd.f32 %v610, %v611
  %v613 = vsel %vm240, %v401, 0.0
  %v614 = vadd.f32 %v612, %v613
  %v615 = vsel %vm240, %v403, 0.0
  %v616 = vadd.f32 %v614, %v615
  %v617 = vsel %vm240, %v406, 0.0
  %v618 = vadd.f32 %v616, %v617
  %v619 = vsel %vm240, %v408, 0.0
  %v620 = vadd.f32 %v618, %v619
  %v621 = vsel %vm240, %v411, 0.0
  %v622 = vadd.f32 %v620, %v621
  %v623 = vsel %vm240, %v413, 0.0
  %v624 = vadd.f32 %v622, %v623
  %v625 = vsel %vm240, %v416, 0.0
  %v626 = vadd.f32 %v624, %v625
  %v627 = vsel %vm240, %v418, 0.0
  %v628 = vadd.f32 %v626, %v627
  %v629 = vsel %vm240, %v421, 0.0
  %v630 = vadd.f32 %v628, %v629
  %v631 = vsel %vm240, %v423, 0.0
  %v632 = vadd.f32 %v630, %v631
  %v633 = vsel %vm240, %v426, 0.0
  %v634 = vadd.f32 %v632, %v633
  %v635 = vsel %vm240, %v428, 0.0
  %v636 = vadd.f32 %v634, %v635
  %v637 = vsel %vm240, %v431, 0.0
  %v638 = vadd.f32 %v636, %v637
  %v639 = vsel %vm240, %v433, 0.0
  %v640 = vadd.f32 %v638, %v639
  %v641 = vsel %vm240, %v436, 0.0
  %v642 = vadd.f32 %v640, %v641
  %v643 = vsel %vm240, %v438, 0.0
  %v644 = vadd.f32 %v642, %v643
  %v645 = vsel %vm240, %v441, 0.0
  %v646 = vadd.f32 %v644, %v645
  %v647 = vsel %vm240, %v443, 0.0
  %v648 = vadd.f32 %v646, %v647
  %v649 = vsel %vm240, %v446, 0.0
  %v650 = vadd.f32 %v648, %v649
  %v651 = vsel %vm240, %v448, 0.0
  %v652 = vadd.f32 %v650, %v651
  %v653 = vsel %vm240, %v451, 0.0
  %v654 = vadd.f32 %v652, %v653
  %v655 = vsel %vm240, %v453, 0.0
  %v656 = vadd.f32 %v654, %v655
  %v657 = vsel %vm240, %v456, 0.0
  %v658 = vadd.f32 %v656, %v657
  %v659 = vsel %vm240, %v458, 0.0
  %v660 = vadd.f32 %v658, %v659
  %v661 = vsel %vm240, %v461, 0.0
  %v662 = vadd.f32 %v660, %v661
  %v663 = vsel %vm240, %v463, 0.0
  %v664 = vadd.f32 %v662, %v663
  %v665 = vsel %vm240, %v466, 0.0
  %v666 = vadd.f32 %v664, %v665
  %v667 = vsel %vm240, %v468, 0.0
  %v668 = vadd.f32 %v666, %v667
  %v669 = vsel %vm240, %v471, 0.0
  %v670 = vadd.f32 %v668, %v669
  %v671 = vsel %vm240, %v473, 0.0
  %v672 = vadd.f32 %v670, %v671
  %v673 = vsel %vm240, %v476, 0.0
  %v674 = vadd.f32 %v672, %v673
  %v675 = vsel %vm240, %v478, 0.0
  %v676 = vadd.f32 %v674, %v675
  %v677 = vsel %vm240, %v481, 0.0
  %v678 = vadd.f32 %v676, %v677
  %v679 = vsel %vm240, %v483, 0.0
  %v680 = vadd.f32 %v678, %v679
  %v681 = vsel %vm240, %v486, 0.0
  %v682 = vadd.f32 %v680, %v681
  %v683 = vsel %vm240, %v488, 0.0
  %v684 = vadd.f32 %v682, %v683
  %v685 = vsel %vm240, %v491, 0.0
  %v686 = vadd.f32 %v684, %v685
  %v687 = vsel %vm240, %v493, 0.0
  %v688 = vadd.f32 %v686, %v687
  %v689 = vsel %vm240, %v496, 0.0
  %v690 = vadd.f32 %v688, %v689
  %v691 = vsel %vm240, %v498, 0.0
  %v692 = vadd.f32 %v690, %v691
  %v693 = vsel %vm240, %v501, 0.0
  %v694 = vadd.f32 %v692, %v693
  %v695 = vsel %vm240, %v503, 0.0
  %v696 = vadd.f32 %v694, %v695
  %v697 = vsel %vm240, %v506, 0.0
  %v698 = vadd.f32 %v696, %v697
  %v699 = vsel %vm240, %v508, 0.0
  %v700 = vadd.f32 %v698, %v699
  %701 = vst.msk [vmem:[%s3] sm:$0xff] %vm240, %v700
  %v702 = vmul.f32 %v351, %v351
  %v703 = vmul.f32 %v353, %v353
  %v704 = vmul.f32 %v356, %v356
  %v705 = vmul.f32 %v358, %v358
  %v706 = vmul.f32 %v361, %v361
  %v707 = vmul.f32 %v363, %v363
  %v708 = vmul.f32 %v366, %v366
  %v709 = vmul.f32 %v368, %v368
  %v710 = vmul.f32 %v371, %v371
  %v711 = vmul.f32 %v373, %v373
  %v712 = vmul.f32 %v376, %v376
  %v713 = vmul.f32 %v378, %v378
  %v714 = vmul.f32 %v381, %v381
  %v715 = vmul.f32 %v383, %v383
  %v716 = vmul.f32 %v386, %v386
  %v717 = vmul.f32 %v388, %v388
  %v718 = vmul.f32 %v391, %v391
  %v719 = vmul.f32 %v393, %v393
  %v720 = vmul.f32 %v396, %v396
  %v721 = vmul.f32 %v398, %v398
  %v722 = vmul.f32 %v401, %v401
  %v723 = vmul.f32 %v403, %v403
  %v724 = vmul.f32 %v406, %v406
  %v725 = vmul.f32 %v408, %v408
  %v726 = vmul.f32 %v411, %v411
  %v727 = vmul.f32 %v413, %v413
  %v728 = vmul.f32 %v416, %v416
  %v729 = vmul.f32 %v418, %v418
  %v730 = vmul.f32 %v421, %v421
  %v731 = vmul.f32 %v423, %v423
  %v732 = vmul.f32 %v426, %v426
  %v733 = vmul.f32 %v428, %v428
  %v734 = vmul.f32 %v431, %v431
  %v735 = vmul.f32 %v433, %v433
  %v736 = vmul.f32 %v436, %v436
  %v737 = vmul.f32 %v438, %v438
  %v738 = vmul.f32 %v441, %v441
  %v739 = vmul.f32 %v443, %v443
  %v740 = vmul.f32 %v446, %v446
  %v741 = vmul.f32 %v448, %v448
  %v742 = vmul.f32 %v451, %v451
  %v743 = vmul.f32 %v453, %v453
  %v744 = vmul.f32 %v456, %v456
  %v745 = vmul.f32 %v458, %v458
  %v746 = vmul.f32 %v461, %v461
  %v747 = vmul.f32 %v463, %v463
  %v748 = vmul.f32 %v466, %v466
  %v749 = vmul.f32 %v468, %v468
  %v750 = vmul.f32 %v471, %v471
  %v751 = vmul.f32 %v473, %v473
  %v752 = vmul.f32 %v476, %v476
  %v753 = vmul.f32 %v478, %v478
  %v754 = vmul.f32 %v481, %v481
  %v755 = vmul.f32 %v483, %v483
  %v756 = vmul.f32 %v486, %v486
  %v757 = vmul.f32 %v488, %v488
  %v758 = vmul.f32 %v491, %v491
  %v759 = vmul.f32 %v493, %v493
  %v760 = vmul.f32 %v496, %v496
  %v761 = vmul.f32 %v498, %v498
  %v762 = vmul.f32 %v501, %v501
  %v763 = vmul.f32 %v503, %v503
  %v764 = vmul.f32 %v506, %v506
  %v765 = vmul.f32 %v508, %v508
  %v766 = vsel %vm240, %v702, 0.0
  %v767 = vsel %vm240, %v703, 0.0
  %v768 = vadd.f32 %v766, %v767
  %v769 = vsel %vm240, %v704, 0.0
  %v770 = vadd.f32 %v768, %v769
  %v771 = vsel %vm240, %v705, 0.0
  %v772 = vadd.f32 %v770, %v771
  %v773 = vsel %vm240, %v706, 0.0
  %v774 = vadd.f32 %v772, %v773
  %v775 = vsel %vm240, %v707, 0.0
  %v776 = vadd.f32 %v774, %v775
  %v777 = vsel %vm240, %v708, 0.0
  %v778 = vadd.f32 %v776, %v777
  %v779 = vsel %vm240, %v709, 0.0
  %v780 = vadd.f32 %v778, %v779
  %v781 = vsel %vm240, %v710, 0.0
  %v782 = vadd.f32 %v780, %v781
  %v783 = vsel %vm240, %v711, 0.0
  %v784 = vadd.f32 %v782, %v783
  %v785 = vsel %vm240, %v712, 0.0
  %v786 = vadd.f32 %v784, %v785
  %v787 = vsel %vm240, %v713, 0.0
  %v788 = vadd.f32 %v786, %v787
  %v789 = vsel %vm240, %v714, 0.0
  %v790 = vadd.f32 %v788, %v789
  %v791 = vsel %vm240, %v715, 0.0
  %v792 = vadd.f32 %v790, %v791
  %v793 = vsel %vm240, %v716, 0.0
  %v794 = vadd.f32 %v792, %v793
  %v795 = vsel %vm240, %v717, 0.0
  %v796 = vadd.f32 %v794, %v795
  %v797 = vsel %vm240, %v718, 0.0
  %v798 = vadd.f32 %v796, %v797
  %v799 = vsel %vm240, %v719, 0.0
  %v800 = vadd.f32 %v798, %v799
  %v801 = vsel %vm240, %v720, 0.0
  %v802 = vadd.f32 %v800, %v801
  %v803 = vsel %vm240, %v721, 0.0
  %v804 = vadd.f32 %v802, %v803
  %v805 = vsel %vm240, %v722, 0.0
  %v806 = vadd.f32 %v804, %v805
  %v807 = vsel %vm240, %v723, 0.0
  %v808 = vadd.f32 %v806, %v807
  %v809 = vsel %vm240, %v724, 0.0
  %v810 = vadd.f32 %v808, %v809
  %v811 = vsel %vm240, %v725, 0.0
  %v812 = vadd.f32 %v810, %v811
  %v813 = vsel %vm240, %v726, 0.0
  %v814 = vadd.f32 %v812, %v813
  %v815 = vsel %vm240, %v727, 0.0
  %v816 = vadd.f32 %v814, %v815
  %v817 = vsel %vm240, %v728, 0.0
  %v818 = vadd.f32 %v816, %v817
  %v819 = vsel %vm240, %v729, 0.0
  %v820 = vadd.f32 %v818, %v819
  %v821 = vsel %vm240, %v730, 0.0
  %v822 = vadd.f32 %v820, %v821
  %v823 = vsel %vm240, %v731, 0.0
  %v824 = vadd.f32 %v822, %v823
  %v825 = vsel %vm240, %v732, 0.0
  %v826 = vadd.f32 %v824, %v825
  %v827 = vsel %vm240, %v733, 0.0
  %v828 = vadd.f32 %v826, %v827
  %v829 = vsel %vm240, %v734, 0.0
  %v830 = vadd.f32 %v828, %v829
  %v831 = vsel %vm240, %v735, 0.0
  %v832 = vadd.f32 %v830, %v831
  %v833 = vsel %vm240, %v736, 0.0
  %v834 = vadd.f32 %v832, %v833
  %v835 = vsel %vm240, %v737, 0.0
  %v836 = vadd.f32 %v834, %v835
  %v837 = vsel %vm240, %v738, 0.0
  %v838 = vadd.f32 %v836, %v837
  %v839 = vsel %vm240, %v739, 0.0
  %v840 = vadd.f32 %v838, %v839
  %v841 = vsel %vm240, %v740, 0.0
  %v842 = vadd.f32 %v840, %v841
  %v843 = vsel %vm240, %v741, 0.0
  %v844 = vadd.f32 %v842, %v843
  %v845 = vsel %vm240, %v742, 0.0
  %v846 = vadd.f32 %v844, %v845
  %v847 = vsel %vm240, %v743, 0.0
  %v848 = vadd.f32 %v846, %v847
  %v849 = vsel %vm240, %v744, 0.0
  %v850 = vadd.f32 %v848, %v849
  %v851 = vsel %vm240, %v745, 0.0
  %v852 = vadd.f32 %v850, %v851
  %v853 = vsel %vm240, %v746, 0.0
  %v854 = vadd.f32 %v852, %v853
  %v855 = vsel %vm240, %v747, 0.0
  %v856 = vadd.f32 %v854, %v855
  %v857 = vsel %vm240, %v748, 0.0
  %v858 = vadd.f32 %v856, %v857
  %v859 = vsel %vm240, %v749, 0.0
  %v860 = vadd.f32 %v858, %v859
  %v861 = vsel %vm240, %v750, 0.0
  %v862 = vadd.f32 %v860, %v861
  %v863 = vsel %vm240, %v751, 0.0
  %v864 = vadd.f32 %v862, %v863
  %v865 = vsel %vm240, %v752, 0.0
  %v866 = vadd.f32 %v864, %v865
  %v867 = vsel %vm240, %v753, 0.0
  %v868 = vadd.f32 %v866, %v867
  %v869 = vsel %vm240, %v754, 0.0
  %v870 = vadd.f32 %v868, %v869
  %v871 = vsel %vm240, %v755, 0.0
  %v872 = vadd.f32 %v870, %v871
  %v873 = vsel %vm240, %v756, 0.0
  %v874 = vadd.f32 %v872, %v873
  %v875 = vsel %vm240, %v757, 0.0
  %v876 = vadd.f32 %v874, %v875
  %v877 = vsel %vm240, %v758, 0.0
  %v878 = vadd.f32 %v876, %v877
  %v879 = vsel %vm240, %v759, 0.0
  %v880 = vadd.f32 %v878, %v879
  %v881 = vsel %vm240, %v760, 0.0
  %v882 = vadd.f32 %v880, %v881
  %v883 = vsel %vm240, %v761, 0.0
  %v884 = vadd.f32 %v882, %v883
  %v885 = vsel %vm240, %v762, 0.0
  %v886 = vadd.f32 %v884, %v885
  %v887 = vsel %vm240, %v763, 0.0
  %v888 = vadd.f32 %v886, %v887
  %v889 = vsel %vm240, %v764, 0.0
  %v890 = vadd.f32 %v888, %v889
  %v891 = vsel %vm240, %v765, 0.0
  %v892 = vadd.f32 %v890, %v891
  %893 = vst.msk [vmem:[%s4] sm:$0xff] %vm240, %v892
  // Predicated region
  $region10: #{tpu_custom_call.1} parent=0 // pred_check
    _
  $region11: #{tpu_custom_call.1} parent=0 // pred_check_branch
    %895 = sbr.rel (0) target = $region13
  $region12: #{tpu_custom_call.1} parent=0 // pred_region
    _
  $region13: #{tpu_custom_call.1} parent=0 // pred_fallthru
    _
  // Predicated region
  $region14: #{tpu_custom_call.1} parent=0 // pred_check
    _
  $region15: #{tpu_custom_call.1} parent=0 // pred_check_branch
    %897 = sbr.rel (0) target = $region17
  $region16: #{tpu_custom_call.1} parent=0 // pred_region
    _
  $region17: #{tpu_custom_call.1} parent=0 // pred_fallthru
    _
  // Predicated region
  $region18: #{tpu_custom_call.1} parent=0 // pred_check
    _
  $region19: #{tpu_custom_call.1} parent=0 // pred_check_branch
    %899 = sbr.rel (0) target = $region21
  $region20: #{tpu_custom_call.1} parent=0 // pred_region
    _
  $region21: #{tpu_custom_call.1} parent=0 // pred_fallthru
    _
  // Predicated region
  $region22: #{tpu_custom_call.1} parent=0 // pred_check
    _
  $region23: #{tpu_custom_call.1} parent=0 // pred_check_branch
    %901 = sbr.rel (0) target = $region25
  $region24: #{tpu_custom_call.1} parent=0 // pred_region
    _
  $region25: #{tpu_custom_call.1} parent=0 // pred_fallthru
    _
  // Predicated region
  $region26: #{tpu_custom_call.1} parent=0 // pred_check
    _
  $region27: #{tpu_custom_call.1} parent=0 // pred_check_branch
    %903 = sbr.rel (0) target = $region29
  $region28: #{tpu_custom_call.1} parent=0 // pred_region
    _
  $region29: #{tpu_custom_call.1} parent=0 // pred_fallthru
    _
  // Predicated region
  $region30: #{tpu_custom_call.1} parent=0 // pred_check
    _
  $region31: #{tpu_custom_call.1} parent=0 // pred_check_branch
    %905 = sbr.rel (0) target = $region33
  $region32: #{tpu_custom_call.1} parent=0 // pred_region
    _
  $region33: #{tpu_custom_call.1} parent=0 // pred_fallthru
    _

</llo_original>
